<compile_context>
chip_gen: v5e
topology: v5e:2x2
jax: 0.10.0
libtpu: 0.0.40
codegen_flags: <defaults>
</compile_context>

<pallas_src>
import math

import jax
import jax.numpy as jnp
from jax.experimental import pallas as pl
from jax.experimental.pallas import tpu as pltpu


def layerscale_kernel(x_ref, scale_ref, o_ref):
    # x_ref:     (tile_rows, Dp) tile of the (possibly lane-packed) input
    # scale_ref: (1, Dp) f32 parameter, broadcast over the row axis
    # o_ref:     (tile_rows, Dp) output tile
    x = x_ref[...].astype(jnp.float32)
    s = scale_ref[...].astype(jnp.float32)
    o_ref[...] = (x * s).astype(o_ref.dtype)


def _default_tile_bytes():
    """Pick a row-tile budget per TPU generation (conservative on v5e)."""
    try:
        kind = jax.devices()[0].device_kind.lower()
    except Exception:  # pragma: no cover - non-TPU / CPU fallback
        return 4 * 1024 * 1024
    if "v5" in kind and ("lite" in kind or "v5e" in kind):
        return 3 * 1024 * 1024          # v5e: 16 MiB scoped-VMEM default
    if "v6" in kind or "v7" in kind:
        return 8 * 1024 * 1024          # plenty of HBM BW; halve per-step overhead
    return 4 * 1024 * 1024


def layer_scale(x, scale, *, tile_bytes=None, donate_x=False):
    """x: (..., D); scale: (1, 1, D) (or anything reshapeable to (1, D)), kept f32.

    Returns x * scale computed in f32, cast back to x.dtype, same shape as x.
    """
    orig_shape = x.shape
    D = orig_shape[-1]
    assert scale.shape[-1] == D, (scale.shape, D)

    if tile_bytes is None:
        tile_bytes = _default_tile_bytes()

    # Flatten all leading axes into a single row axis. Scale stays in its own
    # (typically f32) dtype; the kernel computes in f32 and casts at the store.
    x2d = x.reshape(-1, D)
    scale2d = scale.reshape(1, D)
    rows = x2d.shape[0]

    # Lane-dense packing for small / non-multiple-of-128 feature dims: fold k
    # consecutive rows into the lane axis so the output last dim is 128-aligned
    # (unmasked vst instead of masked partial stores).
    Dp, rows_p = D, rows
    packed = False
    if D % 128 != 0:
        k = 128 // math.gcd(D, 128)
        if k > 1 and rows % k == 0:
            Dp = k * D
            rows_p = rows // k
            x2d = x2d.reshape(rows_p, Dp)
            scale2d = jnp.tile(scale2d, (1, k))
            packed = True

    x_itemsize = jnp.dtype(x.dtype).itemsize
    s_itemsize = jnp.dtype(scale2d.dtype).itemsize
    # Sublane packing: 8 rows for 4-byte, 16 for 2-byte, 32 for 1-byte dtypes.
    sublane = 8 * max(1, 4 // x_itemsize)

    # Row tile targeting ~tile_bytes per array tile, rounded to the sublane multiple.
    tr = (tile_bytes // max(1, Dp * x_itemsize)) // sublane * sublane
    tr = max(sublane, tr)
    # Guarantee >= 2 grid steps when the row extent allows it, so the "parallel"
    # grid axis can be split across the 2 TensorCores (v7x) / megacore (v6e).
    if rows_p > sublane:
        half = ((-(-rows_p // 2)) + sublane - 1) // sublane * sublane
        tr = min(tr, half)
    tile_rows = min(rows_p, tr)

    grid = (pl.cdiv(rows_p, tile_rows),)

    # Explicit VMEM budget from the actual double-buffered tile footprint
    # (2 bufs each for in/out tiles + the tiny resident scale) plus slack.
    tile_io_bytes = tile_rows * Dp * x_itemsize
    footprint = 2 * (2 * tile_io_bytes) + 2 * Dp * s_itemsize
    vmem_limit = int(min(64 * 1024 * 1024,
                         max(16 * 1024 * 1024, footprint + 4 * 1024 * 1024)))

    extra_kwargs = {}
    if donate_x:
        # Output reuses x's HBM buffer (caller must donate x at the jit level).
        extra_kwargs["input_output_aliases"] = {0: 0}

    out2d = pl.pallas_call(
        layerscale_kernel,
        out_shape=jax.ShapeDtypeStruct((rows_p, Dp), x.dtype),
        grid_spec=pltpu.PrefetchScalarGridSpec(
            num_scalar_prefetch=0,
            grid=grid,
            in_specs=[
                # Streamed row tiles of the input.
                pl.BlockSpec((tile_rows, Dp), lambda i: (i, 0)),
                # Tiny parameter: same block every step -> stays resident in VMEM.
                pl.BlockSpec((1, Dp), lambda i: (0, 0)),
            ],
            out_specs=pl.BlockSpec((tile_rows, Dp), lambda i: (i, 0)),
        ),
        compiler_params=pltpu.CompilerParams(
            # Pure elementwise streaming op: every row tile is independent, so the
            # grid axis can be sharded across TensorCores (megacore / v7x).
            dimension_semantics=("parallel",),
            vmem_limit_bytes=vmem_limit,
        ),
        cost_estimate=pl.CostEstimate(
            flops=rows * D,
            transcendentals=0,
            bytes_accessed=2 * rows * D * x_itemsize + D * s_itemsize,
        ),
        **extra_kwargs,
    )(x2d, scale2d)

    if packed:
        out2d = out2d.reshape(rows, D)
    return out2d.reshape(orig_shape)


def init_layerscale_params(dim, depth, dtype=jnp.float32):
    """Deterministic init matching the PyTorch module's __init__."""
    if depth <= 18:
        init_eps = 0.1
    elif depth <= 24:
        init_eps = 1e-5
    else:
        init_eps = 1e-6
    return jnp.full((1, 1, dim), init_eps, dtype=dtype)


if __name__ == "__main__":
    key = jax.random.PRNGKey(0)

    # Small shape consistent with the module: (batch, seq, dim) = (2, 8, 32).
    B, N, D = 2, 8, 32
    depth = 12
    x = jax.random.normal(key, (B, N, D), dtype=jnp.float32)
    scale = init_layerscale_params(D, depth)

    # f32 path (exercises the lane-dense packing path for D=32).
    out = jax.block_until_ready(layer_scale(x, scale))
    ref = x * scale
    assert out.shape == x.shape and out.dtype == x.dtype
    assert jnp.allclose(out, ref, atol=1e-6, rtol=1e-6)

    # bf16 path: scale stays f32, kernel multiplies in f32, store casts to bf16.
    x_bf16 = x.astype(jnp.bfloat16)
    out_bf16 = jax.block_until_ready(layer_scale(x_bf16, scale))
    ref_bf16 = (x_bf16.astype(jnp.float32) * scale).astype(jnp.bfloat16)
    assert out_bf16.dtype == jnp.bfloat16
    assert jnp.allclose(out_bf16.astype(jnp.float32),
                        ref_bf16.astype(jnp.float32), atol=1e-2, rtol=1e-2)

    # Slightly larger, 128-aligned shape to exercise the multi-step (>= 2) grid.
    key2 = jax.random.PRNGKey(0)
    x2 = jax.random.normal(key2, (2, 64, 256), dtype=jnp.float32)
    scale2 = init_layerscale_params(256, depth=26)
    out2 = jax.block_until_ready(layer_scale(x2, scale2))
    assert jnp.allclose(out2, x2 * scale2, atol=1e-6, rtol=1e-6)

    print("KERNEL_OK")
</pallas_src>

<mosaic_0001>
module attributes {stable_mosaic.version = 11 : i64} {
  func.func @layerscale_kernel(%arg0: i32, %arg1: memref<4x128xf32, #tpu.memory_space<vmem>>, %arg2: memref<1x128xf32, #tpu.memory_space<vmem>>, %arg3: memref<4x128xf32, #tpu.memory_space<vmem>>) attributes {dimension_semantics = [#tpu.dimension_semantics<parallel>], iteration_bounds = array<i64: 1>, scalar_prefetch = 0 : i64, scratch_operands = 0 : i64, tpu.core_type = #tpu.core_type<tc>, window_params = [{transform_indices = @transform_0, window_bounds = array<i64: 4, 128>}, {pipeline_mode = #tpu.pipeline_mode<synchronous>, transform_indices = @transform_1, window_bounds = array<i64: 1, 128>}, {transform_indices = @transform_2, window_bounds = array<i64: 4, 128>}]} {
    %c0 = arith.constant 0 : index
    %c0_0 = arith.constant 0 : index
    %0 = vector.load %arg1[%c0, %c0_0] : memref<4x128xf32, #tpu.memory_space<vmem>>, vector<4x128xf32>
    %c0_1 = arith.constant 0 : index
    %c0_2 = arith.constant 0 : index
    %1 = vector.load %arg2[%c0_1, %c0_2] : memref<1x128xf32, #tpu.memory_space<vmem>>, vector<1x128xf32>
    %2 = vector.broadcast %1 : vector<1x128xf32> to vector<4x128xf32>
    %3 = arith.mulf %0, %2 : vector<4x128xf32>
    %c0_3 = arith.constant 0 : index
    %c0_4 = arith.constant 0 : index
    %4 = vector.load %arg3[%c0_3, %c0_4] : memref<4x128xf32, #tpu.memory_space<vmem>>, vector<4x128xf32>
    tpu.vector_store %arg3[%c0_3, %c0_4], %3 {strides = array<i32>} : memref<4x128xf32, #tpu.memory_space<vmem>>, vector<4x128xf32>,
    return
  }
  func.func @transform_0(%arg0: i32) -> (i32, i32) {
    %c0_i32 = arith.constant 0 : i32
    %c0_i32_0 = arith.constant 0 : i32
    return %arg0, %c0_i32 : i32, i32
  }
  func.func @transform_1(%arg0: i32) -> (i32, i32) {
    %c0_i32 = arith.constant 0 : i32
    %c0_i32_0 = arith.constant 0 : i32
    %c0_i32_1 = arith.constant 0 : i32
    return %c0_i32, %c0_i32_0 : i32, i32
  }
  func.func @transform_2(%arg0: i32) -> (i32, i32) {
    %c0_i32 = arith.constant 0 : i32
    %c0_i32_0 = arith.constant 0 : i32
    return %arg0, %c0_i32 : i32, i32
  }
}

</mosaic_0001>

<llo_original>
// kernel: tpu_custom_call.1
$region0: #{tpu_custom_call.1}
  #allocation0 [shape = 'u32[]', space=smem, size = 0x4, offset = 0x4, fixed_abs, tag = 'smem constant byte address 0x4 - core index']
  #allocation1 [shape = 'u32[72,128]{1,0:T(1,128)}', space=vmem, size = 0x9000, scoped, tag = 'internal scratch']
  %s0 = inlined_call_operand.hbm [shape: f32[4,128], index: 0, kind: input, shape index: {}]
  %s1 = inlined_call_operand.hbm [shape: f32[1,128], index: 1, kind: input, shape index: {}]
  %s2 = inlined_call_operand.hbm [shape: f32[4,128], index: 2, kind: output, shape index: {}]
  %s3 = sld [smem:[#allocation0]]
  $region26: #{tpu_custom_call.1} parent=0
    _
  %s5 = ssub.s32 1, %s3
  %s6 = scalar_select 0, %s5, %s3
  $region1: #{tpu_custom_call.1} parent=0
    #allocation2 [shape = 'u8[2048]{0}', space=vmem, size = 0x800, scoped, tag = 'input window, operand 0, single buffered']
    #allocation3 [shape = 's32[1]{0}', space=sflag, size = 0x4, scoped, tag = 'scoped memory for tpu_custom_call.1']
    #allocation4 [shape = 's32[1]{0}', space=sflag, size = 0x4, scoped, tag = 'scoped memory for tpu_custom_call.1']
    #allocation5 [shape = 'u8[512]{0}', space=vmem, size = 0x400, scoped, tag = 'input window, operand 1, single buffered']
    #allocation6 [shape = 's32[1]{0}', space=sflag, size = 0x4, scoped, tag = 'scoped memory for tpu_custom_call.1']
    #allocation7 [shape = 'u8[2048]{0}', space=vmem, size = 0x800, scoped, tag = 'output window, operand 0, single buffered']
    %7 = vsyncpa [#allocation3], 0
    %8 = vsyncpa [#allocation6], 0
    %9 = vsyncpa [#allocation4], 0
    // Predicated region
    $region2: #{tpu_custom_call.1} parent=1 // pred_check
      _
    $region3: #{tpu_custom_call.1} parent=1 // pred_check_branch
      %11 = sbr.rel (0) target = $region5
    $region4: #{tpu_custom_call.1} parent=1 // pred_region
      %13 = vsyncadd [#allocation3], 0
      %s15 = sshll.u32 %s0, 4
      %s16 = int_to_ptr.hbm [resolvable:$true] %s15
      %s17 = sshll.u32 [#allocation2], 4
      %s18 = int_to_ptr.vmem [resolvable:$true] %s17
      %20 = dma.hbm_to_vmem [thread:$0]  %s16, 64, %s18, [#allocation3]
    $region5: #{tpu_custom_call.1} parent=1 // pred_fallthru
      _
    // Predicated region
    $region6: #{tpu_custom_call.1} parent=1 // pred_check
      _
    $region7: #{tpu_custom_call.1} parent=1 // pred_check_branch
      %22 = sbr.rel (0) target = $region9
    $region8: #{tpu_custom_call.1} parent=1 // pred_region
      %24 = vsyncadd [#allocation6], 0
      %s26 = sshll.u32 %s1, 4
      %s27 = int_to_ptr.hbm [resolvable:$true] %s26
      %s28 = sshll.u32 [#allocation5], 4
      %s29 = int_to_ptr.vmem [resolvable:$true] %s28
      %31 = dma.hbm_to_vmem [thread:$0]  %s27, 16, %s29, [#allocation6]
    $region9: #{tpu_custom_call.1} parent=1 // pred_fallthru
      _
    // Predicated region
    $region10: #{tpu_custom_call.1} parent=1 // pred_check
      _
    $region11: #{tpu_custom_call.1} parent=1 // pred_check_branch
      %33 = sbr.rel (0) target = $region13
    $region12: #{tpu_custom_call.1} parent=1 // pred_region
      %35 = dma.done [#allocation3], 64
    $region13: #{tpu_custom_call.1} parent=1 // pred_fallthru
      _
    // Predicated region
    $region14: #{tpu_custom_call.1} parent=1 // pred_check
      _
    $region15: #{tpu_custom_call.1} parent=1 // pred_check_branch
      %37 = sbr.rel (0) target = $region17
    $region16: #{tpu_custom_call.1} parent=1 // pred_region
      %39 = dma.done [#allocation6], 16
    $region17: #{tpu_custom_call.1} parent=1 // pred_fallthru
      _
    %v40 = vld [vmem:[#allocation2] sm:$0xf]
    %v41 = vld [vmem:[#allocation5] sm:$0x1]
    %v43 = vperm.slane %v41, 0
    %v45 = vmul.f32 %v40, %v43
    %46 = vst [vmem:[#allocation7] sm:$0xf] %v45
    // Predicated region
    $region18: #{tpu_custom_call.1} parent=1 // pred_check
      _
    $region19: #{tpu_custom_call.1} parent=1 // pred_check_branch
      %48 = sbr.rel (0) target = $region21
    $region20: #{tpu_custom_call.1} parent=1 // pred_region
      %50 = vsyncadd [#allocation4], 0
      %s52 = sshll.u32 [#allocation7], 4
      %s53 = int_to_ptr.vmem [resolvable:$true] %s52
      %s54 = sshll.u32 %s2, 4
      %s55 = int_to_ptr.hbm [resolvable:$true] %s54
      %57 = dma.vmem_to_hbm [thread:$0]  %s53, 64, %s55, [#allocation4]
    $region21: #{tpu_custom_call.1} parent=1 // pred_fallthru
      _
    // Predicated region
    $region22: #{tpu_custom_call.1} parent=1 // pred_check
      _
    $region23: #{tpu_custom_call.1} parent=1 // pred_check_branch
      %59 = sbr.rel (0) target = $region25
    $region24: #{tpu_custom_call.1} parent=1 // pred_region
      %61 = dma.done [#allocation4], 64
    $region25: #{tpu_custom_call.1} parent=1 // pred_fallthru
      _
    %62 = vsyncpa [#allocation3], 1
    %63 = vsyncpa [#allocation6], 1
    %64 = vsyncpa [#allocation4], 1

</llo_original>
